<compile_context>
chip_gen: v5e
topology: v5e:2x2
jax: 0.10.0
libtpu: 0.0.40
codegen_flags: <defaults>
</compile_context>

<pallas_src>
import functools

import jax
import jax.numpy as jnp
import numpy as np
from jax.experimental import pallas as pl
from jax.experimental.pallas import tpu as pltpu

# ----- PhyCell configuration ----------------------------------------------
INPUT_DIM = 1          # must be 1 for the module's view() semantics
F_HIDDEN = 49          # must be divisible by 7 (GroupNorm(7, F_hidden))
KH, KW = 7, 7
N_GROUPS = 7
GS = F_HIDDEN // N_GROUPS
EPS = 1e-5             # PyTorch GroupNorm default


# ----- Pallas kernel --------------------------------------------------------
def _phycell_kernel(xwt_ref, w1_ref, b1_ref, a_ref, k0_ref, o_ref, *, bt, h, w):
    """PhyCell.F for `bt` samples (channels on sublanes, pixels on lanes).

    xwt_ref : (bt, KW, (h+6)*w) bf16  width-tap slab: xwt[b,kx,r*w+j] = xpad[b,r,j+kx]
    w1_ref  : (C, KH*KW)        bf16  conv1 weight, tap index t = ky*KW + kx
    b1_ref  : (C, 1)            f32   conv1 bias
    a_ref   : (C, 1)            f32   gamma * w2  (GroupNorm affine folded into conv2)
    k0_ref  : (1, 1)            f32   sum(beta * w2) + b2
    o_ref   : (1, bt, h*w)      f32   lane-dense output rows
    """
    hw = h * w
    c = F_HIDDEN

    # ---- in-kernel im2col for the 7 row taps ------------------------------
    # For each row tap ky, the 7 width taps are already on sublanes, and the
    # flattened (i, j) pixel index is a contiguous lane window of length h*w at
    # lane offset ky*w.  7 static lane slices + 1 sublane concat per sample.
    xwt = xwt_ref[...].astype(jnp.float32)                       # (bt, KW, (h+6)*w)
    slabs = []
    for b in range(bt):
        sb = xwt[b]                                              # (KW, (h+6)*w)
        blocks = [sb[:, ky * w: ky * w + hw] for ky in range(KH)]
        slabs.append(jnp.concatenate(blocks, axis=0))            # (KH*KW, hw)
    xcol_t = slabs[0] if bt == 1 else jnp.concatenate(slabs, axis=-1)  # (49, bt*hw)

    # ---- conv1: one bf16 MXU matmul, f32 accumulate ------------------------
    y = jnp.dot(w1_ref[...], xcol_t.astype(jnp.bfloat16),
                preferred_element_type=jnp.float32)              # (C, bt*hw) f32
    y = y + b1_ref[...]                                          # (C,1) lane-broadcast

    # ---- GroupNorm (single-pass stats) + 1x1 conv2, fused epilogue ---------
    # out[b,p] = sum_c coef[b,c] * y[b,c,p] + const[b]
    #   coef[b,c]  = gamma_c * w2_c * inv_std_{b,g(c)}
    #   const[b]   = sum_c w2_c*beta_c + b2 - sum_c coef[b,c]*mu_{b,g(c)}
    inv_cnt = 1.0 / float(hw * GS)
    a = a_ref[...]                                               # (C, 1)
    k0 = k0_ref[...]                                             # (1, 1)
    coef_blk, const_blk = [], []
    for b in range(bt):
        yb = y[:, b * hw:(b + 1) * hw]                           # (C, hw) aligned slice
        s1 = jnp.sum(yb, axis=-1, keepdims=True)                 # (C, 1)  one pass
        s2 = jnp.sum(yb * yb, axis=-1, keepdims=True)            # (C, 1)  one pass
        mus, invs = [], []
        for g in range(N_GROUPS):                                # tiny (GS,1) vectors only
            sl = slice(g * GS, (g + 1) * GS)
            mu_g = jnp.sum(s1[sl], axis=0, keepdims=True) * inv_cnt      # (1, 1)
            ex2_g = jnp.sum(s2[sl], axis=0, keepdims=True) * inv_cnt
            inv_g = jax.lax.rsqrt(ex2_g - mu_g * mu_g + EPS)
            mus.append(jnp.broadcast_to(mu_g, (GS, 1)))
            invs.append(jnp.broadcast_to(inv_g, (GS, 1)))
        mu = jnp.concatenate(mus, axis=0)                        # (C, 1)
        inv = jnp.concatenate(invs, axis=0)                      # (C, 1)
        coef = a * inv                                           # (C, 1)
        const = k0 - jnp.sum(coef * mu, axis=0, keepdims=True)   # (1, 1)
        coef_blk.append(jnp.broadcast_to(coef, (c, hw)))
        const_blk.append(jnp.broadcast_to(const, (1, hw)))
    coef_full = coef_blk[0] if bt == 1 else jnp.concatenate(coef_blk, axis=-1)
    const_full = const_blk[0] if bt == 1 else jnp.concatenate(const_blk, axis=-1)

    # single weighted channel (sublane) reduce -> naturally lane-dense row
    out_row = jnp.sum(y * coef_full, axis=0, keepdims=True) + const_full   # (1, bt*hw)
    o_ref[0] = out_row


# ----- wrapper --------------------------------------------------------------
def _pick_batch_tile(n):
    """Samples per grid step: amortize per-step overhead, keep >= 2 steps (v7x)."""
    for bt in (4, 2, 1):
        if n % bt == 0 and n // bt >= 2:
            return bt
    return 1


def init_params(key):
    k1, k2, k3, k4 = jax.random.split(key, 4)
    fan1 = INPUT_DIM * KH * KW
    bound1 = 1.0 / float(np.sqrt(fan1))
    w1 = jax.random.uniform(k1, (F_HIDDEN, KH * KW), jnp.float32, -bound1, bound1)
    b1 = jax.random.uniform(k2, (F_HIDDEN,), jnp.float32, -bound1, bound1)
    gamma = jnp.ones((F_HIDDEN,), jnp.float32)   # GroupNorm default affine init
    beta = jnp.zeros((F_HIDDEN,), jnp.float32)
    fan2 = F_HIDDEN
    bound2 = 1.0 / float(np.sqrt(fan2))
    w2 = jax.random.uniform(k3, (F_HIDDEN,), jnp.float32, -bound2, bound2)
    b2 = jax.random.uniform(k4, (1,), jnp.float32, -bound2, bound2)
    return dict(w1=w1, b1=b1, gamma=gamma, beta=beta, w2=w2, b2=b2)


@jax.jit
def phycell_forward(x, params):
    x_dims = x.ndim
    x4 = x[:, None, :, :] if x_dims == 3 else x
    n, cin, h, w = x4.shape
    assert cin == INPUT_DIM == 1
    pad = KH // 2
    hw = h * w
    pw = (h + KH - 1) * w

    # Width-tap expansion only (7x, bf16) in plain JAX; the 7 row taps are
    # expanded inside the kernel from overlapping lane windows.
    xpad = jnp.pad(x4[:, 0].astype(jnp.float32), ((0, 0), (pad, pad), (pad, pad)))
    xwt = jnp.stack([xpad[:, :, kx:kx + w] for kx in range(KW)], axis=1)  # (n,KW,h+6,w)
    xwt = xwt.reshape(n, KW, pw).astype(jnp.bfloat16)

    # Pre-folded parameters (GroupNorm affine + conv2 collapse into one reduce).
    w1 = params["w1"].astype(jnp.bfloat16)                                # (C, 49)
    b1 = params["b1"].reshape(F_HIDDEN, 1).astype(jnp.float32)
    a = (params["gamma"] * params["w2"]).reshape(F_HIDDEN, 1).astype(jnp.float32)
    k0 = (jnp.sum(params["beta"] * params["w2"])
          + params["b2"][0]).reshape(1, 1).astype(jnp.float32)

    bt = _pick_batch_tile(n)
    g = n // bt

    kernel = functools.partial(_phycell_kernel, bt=bt, h=h, w=w)
    out = pl.pallas_call(
        kernel,
        out_shape=jax.ShapeDtypeStruct((g, 1, bt * hw), jnp.float32),
        grid=(g,),
        in_specs=[
            pl.BlockSpec((bt, KW, pw), lambda i: (i, 0, 0)),
            pl.BlockSpec((F_HIDDEN, KH * KW), lambda i: (0, 0)),
            pl.BlockSpec((F_HIDDEN, 1), lambda i: (0, 0)),
            pl.BlockSpec((F_HIDDEN, 1), lambda i: (0, 0)),
            pl.BlockSpec((1, 1), lambda i: (0, 0)),
        ],
        out_specs=pl.BlockSpec((1, 1, bt * hw), lambda i: (i, 0, 0)),
        compiler_params=pltpu.CompilerParams(dimension_semantics=("parallel",)),
    )(xwt, w1, b1, a, k0)

    out = out.reshape(n, h, w)
    return out if x_dims == 3 else out[:, None]


# ----- pure-JAX reference (correctness check only) --------------------------
def phycell_reference(x, params):
    x_dims = x.ndim
    x4 = x[:, None, :, :] if x_dims == 3 else x
    # mirror the kernel's bf16 MXU operands (operands rounded to bf16, f32 accumulate)
    xq = x4.astype(jnp.bfloat16).astype(jnp.float32)
    w1q = params["w1"].astype(jnp.bfloat16).astype(jnp.float32)
    w1q = w1q.reshape(F_HIDDEN, INPUT_DIM, KH, KW)
    y = jax.lax.conv_general_dilated(
        xq, w1q, window_strides=(1, 1),
        padding=[(KH // 2, KH // 2), (KW // 2, KW // 2)],
        dimension_numbers=("NCHW", "OIHW", "NCHW"),
        precision=jax.lax.Precision.HIGHEST)
    y = y + params["b1"].reshape(1, F_HIDDEN, 1, 1)
    n, c, h, w = y.shape
    yg = y.reshape(n, N_GROUPS, GS, h, w)
    mu = yg.mean(axis=(2, 3, 4), keepdims=True)
    var = ((yg - mu) ** 2).mean(axis=(2, 3, 4), keepdims=True)
    yn = ((yg - mu) * jax.lax.rsqrt(var + EPS)).reshape(n, c, h, w)
    yn = yn * params["gamma"].reshape(1, c, 1, 1) + params["beta"].reshape(1, c, 1, 1)
    out = jnp.sum(yn * params["w2"].reshape(1, c, 1, 1), axis=1) + params["b2"][0]
    return out if x_dims == 3 else out[:, None]


if __name__ == "__main__":
    key = jax.random.PRNGKey(0)
    pkey, xkey = jax.random.split(key)
    params = init_params(pkey)

    B, H, W = 2, 16, 16
    x = jax.random.normal(xkey, (B, INPUT_DIM, H, W), jnp.float32)   # NCHW, input_dim=1

    # 4-D input branch
    out = jax.block_until_ready(phycell_forward(x, params))
    assert out.shape == (B, 1, H, W), out.shape
    ref = phycell_reference(x, params)
    np.testing.assert_allclose(np.asarray(out), np.asarray(ref), rtol=1e-4, atol=1e-4)

    # 3-D input branch
    out3 = jax.block_until_ready(phycell_forward(x[:, 0], params))
    assert out3.shape == (B, H, W), out3.shape
    np.testing.assert_allclose(np.asarray(out3), np.asarray(out[:, 0]),
                               rtol=1e-5, atol=1e-5)

    print("KERNEL_OK")
</pallas_src>

<mosaic_0001>
module attributes {stable_mosaic.version = 11 : i64} {
  func.func @_phycell_kernel(%arg0: i32, %arg1: memref<1x7x352xbf16, #tpu.memory_space<vmem>>, %arg2: memref<49x49xbf16, #tpu.memory_space<vmem>>, %arg3: memref<49x1xf32, #tpu.memory_space<vmem>>, %arg4: memref<49x1xf32, #tpu.memory_space<vmem>>, %arg5: memref<1x1xf32, #tpu.memory_space<vmem>>, %arg6: memref<1x1x256xf32, #tpu.memory_space<vmem>>) attributes {dimension_semantics = [#tpu.dimension_semantics<parallel>], iteration_bounds = array<i64: 2>, scalar_prefetch = 0 : i64, scratch_operands = 0 : i64, tpu.core_type = #tpu.core_type<tc>, window_params = [{transform_indices = @transform_0, window_bounds = array<i64: 1, 7, 352>}, {pipeline_mode = #tpu.pipeline_mode<synchronous>, transform_indices = @transform_1, window_bounds = array<i64: 49, 49>}, {pipeline_mode = #tpu.pipeline_mode<synchronous>, transform_indices = @transform_2, window_bounds = array<i64: 49, 1>}, {pipeline_mode = #tpu.pipeline_mode<synchronous>, transform_indices = @transform_3, window_bounds = array<i64: 49, 1>}, {pipeline_mode = #tpu.pipeline_mode<synchronous>, transform_indices = @transform_4, window_bounds = array<i64: 1, 1>}, {transform_indices = @transform_5, window_bounds = array<i64: 1, 1, 256>}]} {
    %c0 = arith.constant 0 : index
    %c0_0 = arith.constant 0 : index
    %c0_1 = arith.constant 0 : index
    %0 = vector.load %arg1[%c0, %c0_0, %c0_1] : memref<1x7x352xbf16, #tpu.memory_space<vmem>>, vector<1x7x352xbf16>
    %1 = arith.extf %0 : vector<1x7x352xbf16> to vector<1x7x352xf32>
    %2 = vector.shape_cast %1 : vector<1x7x352xf32> to vector<7x352xf32>
    %3 = vector.extract_strided_slice %2 {offsets = [0, 0], sizes = [7, 256], strides = [1, 1]} : vector<7x352xf32> to vector<7x256xf32>
    %4 = vector.extract_strided_slice %2 {offsets = [0, 16], sizes = [7, 256], strides = [1, 1]} : vector<7x352xf32> to vector<7x256xf32>
    %5 = vector.extract_strided_slice %2 {offsets = [0, 32], sizes = [7, 256], strides = [1, 1]} : vector<7x352xf32> to vector<7x256xf32>
    %6 = vector.extract_strided_slice %2 {offsets = [0, 48], sizes = [7, 256], strides = [1, 1]} : vector<7x352xf32> to vector<7x256xf32>
    %7 = vector.extract_strided_slice %2 {offsets = [0, 64], sizes = [7, 256], strides = [1, 1]} : vector<7x352xf32> to vector<7x256xf32>
    %8 = vector.extract_strided_slice %2 {offsets = [0, 80], sizes = [7, 256], strides = [1, 1]} : vector<7x352xf32> to vector<7x256xf32>
    %9 = vector.extract_strided_slice %2 {offsets = [0, 96], sizes = [7, 256], strides = [1, 1]} : vector<7x352xf32> to vector<7x256xf32>
    %10 = tpu.concatenate %3, %4, %5, %6, %7, %8, %9 in 0 : vector<7x256xf32>, vector<7x256xf32>, vector<7x256xf32>, vector<7x256xf32>, vector<7x256xf32>, vector<7x256xf32>, vector<7x256xf32> -> vector<49x256xf32>
    %c0_2 = arith.constant 0 : index
    %c0_3 = arith.constant 0 : index
    %11 = vector.load %arg2[%c0_2, %c0_3] : memref<49x49xbf16, #tpu.memory_space<vmem>>, vector<49x49xbf16>
    %12 = arith.truncf %10 : vector<49x256xf32> to vector<49x256xbf16>
    %cst = arith.constant dense<0.000000e+00> : vector<49x256xf32>
    %13 = tpu.matmul %11, %12, %cst {dimension_numbers = #tpu.dot_dimension_numbers<[1], [0], [0], [1], [0, 0, 1, 1], [], []>} : vector<49x49xbf16>, vector<49x256xbf16>, vector<49x256xf32> -> vector<49x256xf32>
    %c0_4 = arith.constant 0 : index
    %c0_5 = arith.constant 0 : index
    %14 = vector.load %arg3[%c0_4, %c0_5] : memref<49x1xf32, #tpu.memory_space<vmem>>, vector<49x1xf32>
    %15 = vector.broadcast %14 : vector<49x1xf32> to vector<49x256xf32>
    %16 = arith.addf %13, %15 : vector<49x256xf32>
    %c0_6 = arith.constant 0 : index
    %c0_7 = arith.constant 0 : index
    %17 = vector.load %arg4[%c0_6, %c0_7] : memref<49x1xf32, #tpu.memory_space<vmem>>, vector<49x1xf32>
    %c0_8 = arith.constant 0 : index
    %c0_9 = arith.constant 0 : index
    %18 = vector.load %arg5[%c0_8, %c0_9] : memref<1x1xf32, #tpu.memory_space<vmem>>, vector<1x1xf32>
    %cst_10 = arith.constant dense<0.000000e+00> : vector<49xf32>
    %19 = vector.multi_reduction <add>, %16, %cst_10 [1] : vector<49x256xf32> to vector<49xf32>
    %20 = vector.shape_cast %19 : vector<49xf32> to vector<49x1xf32>
    %21 = arith.mulf %16, %16 : vector<49x256xf32>
    %cst_11 = arith.constant dense<0.000000e+00> : vector<49xf32>
    %22 = vector.multi_reduction <add>, %21, %cst_11 [1] : vector<49x256xf32> to vector<49xf32>
    %23 = vector.shape_cast %22 : vector<49xf32> to vector<49x1xf32>
    %24 = vector.extract_strided_slice %20 {offsets = [0, 0], sizes = [7, 1], strides = [1, 1]} : vector<49x1xf32> to vector<7x1xf32>
    %cst_12 = arith.constant dense<0.000000e+00> : vector<1xf32>
    %25 = vector.multi_reduction <add>, %24, %cst_12 [0] : vector<7x1xf32> to vector<1xf32>
    %26 = vector.shape_cast %25 : vector<1xf32> to vector<1x1xf32>
    %cst_13 = arith.constant 5.58035739E-4 : f32
    %27 = vector.broadcast %cst_13 : f32 to vector<1x1xf32>
    %28 = arith.mulf %26, %27 : vector<1x1xf32>
    %29 = vector.extract_strided_slice %23 {offsets = [0, 0], sizes = [7, 1], strides = [1, 1]} : vector<49x1xf32> to vector<7x1xf32>
    %cst_14 = arith.constant dense<0.000000e+00> : vector<1xf32>
    %30 = vector.multi_reduction <add>, %29, %cst_14 [0] : vector<7x1xf32> to vector<1xf32>
    %31 = vector.shape_cast %30 : vector<1xf32> to vector<1x1xf32>
    %cst_15 = arith.constant 5.58035739E-4 : f32
    %32 = vector.broadcast %cst_15 : f32 to vector<1x1xf32>
    %33 = arith.mulf %31, %32 : vector<1x1xf32>
    %34 = arith.mulf %28, %28 : vector<1x1xf32>
    %35 = arith.subf %33, %34 : vector<1x1xf32>
    %cst_16 = arith.constant 9.99999974E-6 : f32
    %36 = vector.broadcast %cst_16 : f32 to vector<1x1xf32>
    %37 = arith.addf %35, %36 : vector<1x1xf32>
    %38 = math.rsqrt %37 : vector<1x1xf32>
    %39 = vector.shape_cast %28 : vector<1x1xf32> to vector<1x1xf32>
    %40 = vector.broadcast %39 : vector<1x1xf32> to vector<7x1xf32>
    %41 = vector.shape_cast %38 : vector<1x1xf32> to vector<1x1xf32>
    %42 = vector.broadcast %41 : vector<1x1xf32> to vector<7x1xf32>
    %43 = vector.extract_strided_slice %20 {offsets = [7, 0], sizes = [7, 1], strides = [1, 1]} : vector<49x1xf32> to vector<7x1xf32>
    %cst_17 = arith.constant dense<0.000000e+00> : vector<1xf32>
    %44 = vector.multi_reduction <add>, %43, %cst_17 [0] : vector<7x1xf32> to vector<1xf32>
    %45 = vector.shape_cast %44 : vector<1xf32> to vector<1x1xf32>
    %cst_18 = arith.constant 5.58035739E-4 : f32
    %46 = vector.broadcast %cst_18 : f32 to vector<1x1xf32>
    %47 = arith.mulf %45, %46 : vector<1x1xf32>
    %48 = vector.extract_strided_slice %23 {offsets = [7, 0], sizes = [7, 1], strides = [1, 1]} : vector<49x1xf32> to vector<7x1xf32>
    %cst_19 = arith.constant dense<0.000000e+00> : vector<1xf32>
    %49 = vector.multi_reduction <add>, %48, %cst_19 [0] : vector<7x1xf32> to vector<1xf32>
    %50 = vector.shape_cast %49 : vector<1xf32> to vector<1x1xf32>
    %cst_20 = arith.constant 5.58035739E-4 : f32
    %51 = vector.broadcast %cst_20 : f32 to vector<1x1xf32>
    %52 = arith.mulf %50, %51 : vector<1x1xf32>
    %53 = arith.mulf %47, %47 : vector<1x1xf32>
    %54 = arith.subf %52, %53 : vector<1x1xf32>
    %cst_21 = arith.constant 9.99999974E-6 : f32
    %55 = vector.broadcast %cst_21 : f32 to vector<1x1xf32>
    %56 = arith.addf %54, %55 : vector<1x1xf32>
    %57 = math.rsqrt %56 : vector<1x1xf32>
    %58 = vector.shape_cast %47 : vector<1x1xf32> to vector<1x1xf32>
    %59 = vector.broadcast %58 : vector<1x1xf32> to vector<7x1xf32>
    %60 = vector.shape_cast %57 : vector<1x1xf32> to vector<1x1xf32>
    %61 = vector.broadcast %60 : vector<1x1xf32> to vector<7x1xf32>
    %62 = vector.extract_strided_slice %20 {offsets = [14, 0], sizes = [7, 1], strides = [1, 1]} : vector<49x1xf32> to vector<7x1xf32>
    %cst_22 = arith.constant dense<0.000000e+00> : vector<1xf32>
    %63 = vector.multi_reduction <add>, %62, %cst_22 [0] : vector<7x1xf32> to vector<1xf32>
    %64 = vector.shape_cast %63 : vector<1xf32> to vector<1x1xf32>
    %cst_23 = arith.constant 5.58035739E-4 : f32
    %65 = vector.broadcast %cst_23 : f32 to vector<1x1xf32>
    %66 = arith.mulf %64, %65 : vector<1x1xf32>
    %67 = vector.extract_strided_slice %23 {offsets = [14, 0], sizes = [7, 1], strides = [1, 1]} : vector<49x1xf32> to vector<7x1xf32>
    %cst_24 = arith.constant dense<0.000000e+00> : vector<1xf32>
    %68 = vector.multi_reduction <add>, %67, %cst_24 [0] : vector<7x1xf32> to vector<1xf32>
    %69 = vector.shape_cast %68 : vector<1xf32> to vector<1x1xf32>
    %cst_25 = arith.constant 5.58035739E-4 : f32
    %70 = vector.broadcast %cst_25 : f32 to vector<1x1xf32>
    %71 = arith.mulf %69, %70 : vector<1x1xf32>
    %72 = arith.mulf %66, %66 : vector<1x1xf32>
    %73 = arith.subf %71, %72 : vector<1x1xf32>
    %cst_26 = arith.constant 9.99999974E-6 : f32
    %74 = vector.broadcast %cst_26 : f32 to vector<1x1xf32>
    %75 = arith.addf %73, %74 : vector<1x1xf32>
    %76 = math.rsqrt %75 : vector<1x1xf32>
    %77 = vector.shape_cast %66 : vector<1x1xf32> to vector<1x1xf32>
    %78 = vector.broadcast %77 : vector<1x1xf32> to vector<7x1xf32>
    %79 = vector.shape_cast %76 : vector<1x1xf32> to vector<1x1xf32>
    %80 = vector.broadcast %79 : vector<1x1xf32> to vector<7x1xf32>
    %81 = vector.extract_strided_slice %20 {offsets = [21, 0], sizes = [7, 1], strides = [1, 1]} : vector<49x1xf32> to vector<7x1xf32>
    %cst_27 = arith.constant dense<0.000000e+00> : vector<1xf32>
    %82 = vector.multi_reduction <add>, %81, %cst_27 [0] : vector<7x1xf32> to vector<1xf32>
    %83 = vector.shape_cast %82 : vector<1xf32> to vector<1x1xf32>
    %cst_28 = arith.constant 5.58035739E-4 : f32
    %84 = vector.broadcast %cst_28 : f32 to vector<1x1xf32>
    %85 = arith.mulf %83, %84 : vector<1x1xf32>
    %86 = vector.extract_strided_slice %23 {offsets = [21, 0], sizes = [7, 1], strides = [1, 1]} : vector<49x1xf32> to vector<7x1xf32>
    %cst_29 = arith.constant dense<0.000000e+00> : vector<1xf32>
    %87 = vector.multi_reduction <add>, %86, %cst_29 [0] : vector<7x1xf32> to vector<1xf32>
    %88 = vector.shape_cast %87 : vector<1xf32> to vector<1x1xf32>
    %cst_30 = arith.constant 5.58035739E-4 : f32
    %89 = vector.broadcast %cst_30 : f32 to vector<1x1xf32>
    %90 = arith.mulf %88, %89 : vector<1x1xf32>
    %91 = arith.mulf %85, %85 : vector<1x1xf32>
    %92 = arith.subf %90, %91 : vector<1x1xf32>
    %cst_31 = arith.constant 9.99999974E-6 : f32
    %93 = vector.broadcast %cst_31 : f32 to vector<1x1xf32>
    %94 = arith.addf %92, %93 : vector<1x1xf32>
    %95 = math.rsqrt %94 : vector<1x1xf32>
    %96 = vector.shape_cast %85 : vector<1x1xf32> to vector<1x1xf32>
    %97 = vector.broadcast %96 : vector<1x1xf32> to vector<7x1xf32>
    %98 = vector.shape_cast %95 : vector<1x1xf32> to vector<1x1xf32>
    %99 = vector.broadcast %98 : vector<1x1xf32> to vector<7x1xf32>
    %100 = vector.extract_strided_slice %20 {offsets = [28, 0], sizes = [7, 1], strides = [1, 1]} : vector<49x1xf32> to vector<7x1xf32>
    %cst_32 = arith.constant dense<0.000000e+00> : vector<1xf32>
    %101 = vector.multi_reduction <add>, %100, %cst_32 [0] : vector<7x1xf32> to vector<1xf32>
    %102 = vector.shape_cast %101 : vector<1xf32> to vector<1x1xf32>
    %cst_33 = arith.constant 5.58035739E-4 : f32
    %103 = vector.broadcast %cst_33 : f32 to vector<1x1xf32>
    %104 = arith.mulf %102, %103 : vector<1x1xf32>
    %105 = vector.extract_strided_slice %23 {offsets = [28, 0], sizes = [7, 1], strides = [1, 1]} : vector<49x1xf32> to vector<7x1xf32>
    %cst_34 = arith.constant dense<0.000000e+00> : vector<1xf32>
    %106 = vector.multi_reduction <add>, %105, %cst_34 [0] : vector<7x1xf32> to vector<1xf32>
    %107 = vector.shape_cast %106 : vector<1xf32> to vector<1x1xf32>
    %cst_35 = arith.constant 5.58035739E-4 : f32
    %108 = vector.broadcast %cst_35 : f32 to vector<1x1xf32>
    %109 = arith.mulf %107, %108 : vector<1x1xf32>
    %110 = arith.mulf %104, %104 : vector<1x1xf32>
    %111 = arith.subf %109, %110 : vector<1x1xf32>
    %cst_36 = arith.constant 9.99999974E-6 : f32
    %112 = vector.broadcast %cst_36 : f32 to vector<1x1xf32>
    %113 = arith.addf %111, %112 : vector<1x1xf32>
    %114 = math.rsqrt %113 : vector<1x1xf32>
    %115 = vector.shape_cast %104 : vector<1x1xf32> to vector<1x1xf32>
    %116 = vector.broadcast %115 : vector<1x1xf32> to vector<7x1xf32>
    %117 = vector.shape_cast %114 : vector<1x1xf32> to vector<1x1xf32>
    %118 = vector.broadcast %117 : vector<1x1xf32> to vector<7x1xf32>
    %119 = vector.extract_strided_slice %20 {offsets = [35, 0], sizes = [7, 1], strides = [1, 1]} : vector<49x1xf32> to vector<7x1xf32>
    %cst_37 = arith.constant dense<0.000000e+00> : vector<1xf32>
    %120 = vector.multi_reduction <add>, %119, %cst_37 [0] : vector<7x1xf32> to vector<1xf32>
    %121 = vector.shape_cast %120 : vector<1xf32> to vector<1x1xf32>
    %cst_38 = arith.constant 5.58035739E-4 : f32
    %122 = vector.broadcast %cst_38 : f32 to vector<1x1xf32>
    %123 = arith.mulf %121, %122 : vector<1x1xf32>
    %124 = vector.extract_strided_slice %23 {offsets = [35, 0], sizes = [7, 1], strides = [1, 1]} : vector<49x1xf32> to vector<7x1xf32>
    %cst_39 = arith.constant dense<0.000000e+00> : vector<1xf32>
    %125 = vector.multi_reduction <add>, %124, %cst_39 [0] : vector<7x1xf32> to vector<1xf32>
    %126 = vector.shape_cast %125 : vector<1xf32> to vector<1x1xf32>
    %cst_40 = arith.constant 5.58035739E-4 : f32
    %127 = vector.broadcast %cst_40 : f32 to vector<1x1xf32>
    %128 = arith.mulf %126, %127 : vector<1x1xf32>
    %129 = arith.mulf %123, %123 : vector<1x1xf32>
    %130 = arith.subf %128, %129 : vector<1x1xf32>
    %cst_41 = arith.constant 9.99999974E-6 : f32
    %131 = vector.broadcast %cst_41 : f32 to vector<1x1xf32>
    %132 = arith.addf %130, %131 : vector<1x1xf32>
    %133 = math.rsqrt %132 : vector<1x1xf32>
    %134 = vector.shape_cast %123 : vector<1x1xf32> to vector<1x1xf32>
    %135 = vector.broadcast %134 : vector<1x1xf32> to vector<7x1xf32>
    %136 = vector.shape_cast %133 : vector<1x1xf32> to vector<1x1xf32>
    %137 = vector.broadcast %136 : vector<1x1xf32> to vector<7x1xf32>
    %138 = vector.extract_strided_slice %20 {offsets = [42, 0], sizes = [7, 1], strides = [1, 1]} : vector<49x1xf32> to vector<7x1xf32>
    %cst_42 = arith.constant dense<0.000000e+00> : vector<1xf32>
    %139 = vector.multi_reduction <add>, %138, %cst_42 [0] : vector<7x1xf32> to vector<1xf32>
    %140 = vector.shape_cast %139 : vector<1xf32> to vector<1x1xf32>
    %cst_43 = arith.constant 5.58035739E-4 : f32
    %141 = vector.broadcast %cst_43 : f32 to vector<1x1xf32>
    %142 = arith.mulf %140, %141 : vector<1x1xf32>
    %143 = vector.extract_strided_slice %23 {offsets = [42, 0], sizes = [7, 1], strides = [1, 1]} : vector<49x1xf32> to vector<7x1xf32>
    %cst_44 = arith.constant dense<0.000000e+00> : vector<1xf32>
    %144 = vector.multi_reduction <add>, %143, %cst_44 [0] : vector<7x1xf32> to vector<1xf32>
    %145 = vector.shape_cast %144 : vector<1xf32> to vector<1x1xf32>
    %cst_45 = arith.constant 5.58035739E-4 : f32
    %146 = vector.broadcast %cst_45 : f32 to vector<1x1xf32>
    %147 = arith.mulf %145, %146 : vector<1x1xf32>
    %148 = arith.mulf %142, %142 : vector<1x1xf32>
    %149 = arith.subf %147, %148 : vector<1x1xf32>
    %cst_46 = arith.constant 9.99999974E-6 : f32
    %150 = vector.broadcast %cst_46 : f32 to vector<1x1xf32>
    %151 = arith.addf %149, %150 : vector<1x1xf32>
    %152 = math.rsqrt %151 : vector<1x1xf32>
    %153 = vector.shape_cast %142 : vector<1x1xf32> to vector<1x1xf32>
    %154 = vector.broadcast %153 : vector<1x1xf32> to vector<7x1xf32>
    %155 = vector.shape_cast %152 : vector<1x1xf32> to vector<1x1xf32>
    %156 = vector.broadcast %155 : vector<1x1xf32> to vector<7x1xf32>
    %157 = tpu.concatenate %40, %59, %78, %97, %116, %135, %154 in 0 : vector<7x1xf32>, vector<7x1xf32>, vector<7x1xf32>, vector<7x1xf32>, vector<7x1xf32>, vector<7x1xf32>, vector<7x1xf32> -> vector<49x1xf32>
    %158 = tpu.concatenate %42, %61, %80, %99, %118, %137, %156 in 0 : vector<7x1xf32>, vector<7x1xf32>, vector<7x1xf32>, vector<7x1xf32>, vector<7x1xf32>, vector<7x1xf32>, vector<7x1xf32> -> vector<49x1xf32>
    %159 = arith.mulf %17, %158 : vector<49x1xf32>
    %160 = arith.mulf %159, %157 : vector<49x1xf32>
    %cst_47 = arith.constant dense<0.000000e+00> : vector<1xf32>
    %161 = vector.multi_reduction <add>, %160, %cst_47 [0] : vector<49x1xf32> to vector<1xf32>
    %162 = vector.shape_cast %161 : vector<1xf32> to vector<1x1xf32>
    %163 = arith.subf %18, %162 : vector<1x1xf32>
    %164 = vector.shape_cast %159 : vector<49x1xf32> to vector<49x1xf32>
    %165 = vector.broadcast %164 : vector<49x1xf32> to vector<49x256xf32>
    %166 = vector.shape_cast %163 : vector<1x1xf32> to vector<1x1xf32>
    %167 = vector.broadcast %166 : vector<1x1xf32> to vector<1x256xf32>
    %168 = arith.mulf %16, %165 : vector<49x256xf32>
    %cst_48 = arith.constant dense<0.000000e+00> : vector<256xf32>
    %169 = vector.multi_reduction <add>, %168, %cst_48 [0] : vector<49x256xf32> to vector<256xf32>
    %170 = vector.shape_cast %169 : vector<256xf32> to vector<1x256xf32>
    %171 = arith.addf %170, %167 : vector<1x256xf32>
    %c0_49 = arith.constant 0 : index
    %c0_50 = arith.constant 0 : index
    %c0_51 = arith.constant 0 : index
    %172 = vector.load %arg6[%c0_49, %c0_50, %c0_51] : memref<1x1x256xf32, #tpu.memory_space<vmem>>, vector<1x1x256xf32>
    %173 = vector.shape_cast %172 : vector<1x1x256xf32> to vector<1x256xf32>
    %174 = vector.shape_cast %171 : vector<1x256xf32> to vector<1x1x256xf32>
    tpu.vector_store %arg6[%c0_49, %c0_50, %c0_51], %174 {strides = array<i32>} : memref<1x1x256xf32, #tpu.memory_space<vmem>>, vector<1x1x256xf32>,
    return
  }
  func.func @transform_0(%arg0: i32) -> (i32, i32, i32) {
    %c0_i32 = arith.constant 0 : i32
    %c0_i32_0 = arith.constant 0 : i32
    %c0_i32_1 = arith.constant 0 : i32
    return %arg0, %c0_i32, %c0_i32_0 : i32, i32, i32
  }
  func.func @transform_1(%arg0: i32) -> (i32, i32) {
    %c0_i32 = arith.constant 0 : i32
    %c0_i32_0 = arith.constant 0 : i32
    %c0_i32_1 = arith.constant 0 : i32
    return %c0_i32, %c0_i32_0 : i32, i32
  }
  func.func @transform_2(%arg0: i32) -> (i32, i32) {
    %c0_i32 = arith.constant 0 : i32
    %c0_i32_0 = arith.constant 0 : i32
    %c0_i32_1 = arith.constant 0 : i32
    return %c0_i32, %c0_i32_0 : i32, i32
  }
  func.func @transform_3(%arg0: i32) -> (i32, i32) {
    %c0_i32 = arith.constant 0 : i32
    %c0_i32_0 = arith.constant 0 : i32
    %c0_i32_1 = arith.constant 0 : i32
    return %c0_i32, %c0_i32_0 : i32, i32
  }
  func.func @transform_4(%arg0: i32) -> (i32, i32) {
    %c0_i32 = arith.constant 0 : i32
    %c0_i32_0 = arith.constant 0 : i32
    %c0_i32_1 = arith.constant 0 : i32
    return %c0_i32, %c0_i32_0 : i32, i32
  }
  func.func @transform_5(%arg0: i32) -> (i32, i32, i32) {
    %c0_i32 = arith.constant 0 : i32
    %c0_i32_0 = arith.constant 0 : i32
    %c0_i32_1 = arith.constant 0 : i32
    return %arg0, %c0_i32, %c0_i32_0 : i32, i32, i32
  }
}

</mosaic_0001>

<llo_original>
// kernel: phycell_forward.1
$region0: #{phycell_forward.1}
  #allocation0 [shape = 'u32[]', space=smem, size = 0x4, offset = 0x4, fixed_abs, tag = 'smem constant byte address 0x4 - core index']
  #allocation1 [shape = 'u32[72,128]{1,0:T(1,128)}', space=vmem, size = 0x9000, scoped, tag = 'internal scratch']
  #allocation2 [shape = 'f32[1,1]{1,0:T(1,128)S(1)}', space=vmem, size = 0x200, scoped, tag = 'scoped memory for phycell_forward.1']
  %s0 = inlined_call_operand.vmem [shape: bf16[2,7,352], index: 0, kind: input, shape index: {}]
  %s1 = inlined_call_operand.vmem [shape: bf16[49,49], index: 1, kind: input, shape index: {}]
  %s2 = inlined_call_operand.vmem [shape: f32[49,1], index: 2, kind: input, shape index: {}]
  %s3 = inlined_call_operand.vmem [shape: f32[49,1], index: 3, kind: input, shape index: {}]
  %s4 = inlined_call_operand.<no memory space> [shape: f32[1,1], index: 4, kind: input, shape index: {}]
  %s5 = inlined_call_operand.vmem [shape: f32[2,1,256], index: 5, kind: output, shape index: {}]
  %s6 = sld [smem:[#allocation0]]
  $region53: #{phycell_forward.1} parent=0
    _
  %s8 = ssub.s32 1, %s6
  %s9 = scalar_select 0, %s8, %s6
  %v10 = vstv %s4
  %11 = vst [vmem:[#allocation2] sm:$0x1] %v10
  loop: start=0, step=1, limit=4
  $region2: #{phycell_forward.1} parent=0 // loop_pre_header
    _
  $region3: #{phycell_forward.1} parent=0 // loop_header
    %s13 = sphi 0, %s17
    %p14 = scmp.ge.s32.totalorder %s13, 4
    %s23 = sphi 0, %s25
    %s26 = sphi 0, %s23
    %s27 = sphi 0, %s26
    %s43 = sphi 0, %s27
    %s47 = sphi 0, %s47
    %s49 = sphi 0, %s47
    %s50 = sphi 0, %s49
    %s64 = sphi 0, %s50
    %s68 = sphi 0, %s68
    %s70 = sphi 0, %s68
    %s71 = sphi 0, %s70
    %s85 = sphi 0, %s71
    %s89 = sphi 0, %s89
    %s91 = sphi 0, %s89
    %s92 = sphi 0, %s91
    %s106 = sphi 0, %s92
    %s110 = sphi 0, %s110
    %s112 = sphi 0, %s110
    %s113 = sphi 0, %s112
    %s127 = sphi 0, %s113
    %s133 = sphi 0, %s135
    %s136 = sphi 0, %s133
    %s137 = sphi 0, %s136
    %s153 = sphi 0, %s137
  $region4: #{phycell_forward.1} parent=0 // loop_header_branch
    %16 = sbr.rel (%p14) target = $region8
  $region5: #{phycell_forward.1} parent=0 // loop_body
    %s18 = ssub.s32 %s13, 1
    %s19 = ssub.s32 %s13, 2
    %s20 = sadd.s32 %s13, 1
    %s21 = ssub.s32 %s13, %s20
    %p22 = scmp.eq.s32.totalorder %s21, 0
    %s24 = sadd.s32 %s23, 1
    %s25 = scalar_select %p22, %s23, %s24
    %p28 = pneg %p22
    %p29 = scmp.eq.s32.totalorder %s13, 1
    %p30 = por %p28, %p29
    %p31 = scmp.ne.s32.totalorder %s23, %s26
    %p32 = scmp.eq.s32.totalorder %s13, 0
    %p33 = por %p31, %p32
    %p34 = scmp.ne.s32.totalorder %s23, %s26
    %p35 = scmp.eq.s32.totalorder %s18, 1
    %p36 = por %p34, %p35
    %p37 = scmp.ne.s32.totalorder %s26, %s27
    %p38 = scmp.eq.s32.totalorder %s18, 0
    %p39 = por %p37, %p38
    %p40 = scmp.ne.s32.totalorder %s26, %s27
    %p41 = scmp.eq.s32.totalorder %s19, 1
    %p42 = por %p40, %p41
    %p44 = scmp.ne.s32.totalorder %s27, %s43
    %p45 = scmp.eq.s32.totalorder %s19, 0
    %p46 = por %p44, %p45
    %s48 = sadd.s32 %s47, 1
    %p51 = scmp.eq.s32.totalorder %s13, 1
    %p52 = scmp.ne.s32.totalorder %s47, %s49
    %p53 = scmp.eq.s32.totalorder %s13, 0
    %p54 = por %p52, %p53
    %p55 = scmp.ne.s32.totalorder %s47, %s49
    %p56 = scmp.eq.s32.totalorder %s18, 1
    %p57 = por %p55, %p56
    %p58 = scmp.ne.s32.totalorder %s49, %s50
    %p59 = scmp.eq.s32.totalorder %s18, 0
    %p60 = por %p58, %p59
    %p61 = scmp.ne.s32.totalorder %s49, %s50
    %p62 = scmp.eq.s32.totalorder %s19, 1
    %p63 = por %p61, %p62
    %p65 = scmp.ne.s32.totalorder %s50, %s64
    %p66 = scmp.eq.s32.totalorder %s19, 0
    %p67 = por %p65, %p66
    %s69 = sadd.s32 %s68, 1
    %p72 = scmp.eq.s32.totalorder %s13, 1
    %p73 = scmp.ne.s32.totalorder %s68, %s70
    %p74 = scmp.eq.s32.totalorder %s13, 0
    %p75 = por %p73, %p74
    %p76 = scmp.ne.s32.totalorder %s68, %s70
    %p77 = scmp.eq.s32.totalorder %s18, 1
    %p78 = por %p76, %p77
    %p79 = scmp.ne.s32.totalorder %s70, %s71
    %p80 = scmp.eq.s32.totalorder %s18, 0
    %p81 = por %p79, %p80
    %p82 = scmp.ne.s32.totalorder %s70, %s71
    %p83 = scmp.eq.s32.totalorder %s19, 1
    %p84 = por %p82, %p83
    %p86 = scmp.ne.s32.totalorder %s71, %s85
    %p87 = scmp.eq.s32.totalorder %s19, 0
    %p88 = por %p86, %p87
    %s90 = sadd.s32 %s89, 1
    %p93 = scmp.eq.s32.totalorder %s13, 1
    %p94 = scmp.ne.s32.totalorder %s89, %s91
    %p95 = scmp.eq.s32.totalorder %s13, 0
    %p96 = por %p94, %p95
    %p97 = scmp.ne.s32.totalorder %s89, %s91
    %p98 = scmp.eq.s32.totalorder %s18, 1
    %p99 = por %p97, %p98
    %p100 = scmp.ne.s32.totalorder %s91, %s92
    %p101 = scmp.eq.s32.totalorder %s18, 0
    %p102 = por %p100, %p101
    %p103 = scmp.ne.s32.totalorder %s91, %s92
    %p104 = scmp.eq.s32.totalorder %s19, 1
    %p105 = por %p103, %p104
    %p107 = scmp.ne.s32.totalorder %s92, %s106
    %p108 = scmp.eq.s32.totalorder %s19, 0
    %p109 = por %p107, %p108
    %s111 = sadd.s32 %s110, 1
    %p114 = scmp.eq.s32.totalorder %s13, 1
    %p115 = scmp.ne.s32.totalorder %s110, %s112
    %p116 = scmp.eq.s32.totalorder %s13, 0
    %p117 = por %p115, %p116
    %p118 = scmp.ne.s32.totalorder %s110, %s112
    %p119 = scmp.eq.s32.totalorder %s18, 1
    %p120 = por %p118, %p119
    %p121 = scmp.ne.s32.totalorder %s112, %s113
    %p122 = scmp.eq.s32.totalorder %s18, 0
    %p123 = por %p121, %p122
    %p124 = scmp.ne.s32.totalorder %s112, %s113
    %p125 = scmp.eq.s32.totalorder %s19, 1
    %p126 = por %p124, %p125
    %p128 = scmp.ne.s32.totalorder %s113, %s127
    %p129 = scmp.eq.s32.totalorder %s19, 0
    %p130 = por %p128, %p129
    %s131 = ssub.s32 %s13, %s20
    %p132 = scmp.eq.s32.totalorder %s131, 0
    %s134 = sadd.s32 %s133, 1
    %s135 = scalar_select %p132, %s133, %s134
    %p138 = pneg %p132
    %p139 = scmp.eq.s32.totalorder %s13, 1
    %p140 = por %p138, %p139
    %p141 = scmp.ne.s32.totalorder %s133, %s136
    %p142 = scmp.eq.s32.totalorder %s13, 0
    %p143 = por %p141, %p142
    %p144 = scmp.ne.s32.totalorder %s133, %s136
    %p145 = scmp.eq.s32.totalorder %s18, 1
    %p146 = por %p144, %p145
    %p147 = scmp.ne.s32.totalorder %s136, %s137
    %p148 = scmp.eq.s32.totalorder %s18, 0
    %p149 = por %p147, %p148
    %p150 = scmp.ne.s32.totalorder %s136, %s137
    %p151 = scmp.eq.s32.totalorder %s19, 1
    %p152 = por %p150, %p151
    %p154 = scmp.ne.s32.totalorder %s137, %s153
    %p155 = scmp.eq.s32.totalorder %s19, 0
    %p156 = por %p154, %p155
    %p157 = scmp.le.s32.totalorder 1, %s13
    %p158 = scmp.lt.s32.totalorder %s13, 3
    %p159 = pnand %p157, %p158
    %p160 = pneg %p159
    // Predicated region
    $region9: #{phycell_forward.1} parent=5 // pred_check
      _
    $region10: #{phycell_forward.1} parent=5 // pred_check_branch
      %162 = sbr.rel (%p159) target = $region12
    $region11: #{phycell_forward.1} parent=5 // pred_region
      %s163 = ssub.s32 %s13, 1
      // Predicated region
      $region13: #{phycell_forward.1} parent=11 // pred_check
        %p164 = pneg %p60
      $region14: #{phycell_forward.1} parent=11 // pred_check_branch
        %166 = sbr.rel (%p164) target = $region16
      $region15: #{phycell_forward.1} parent=11 // pred_region
        _
      $region16: #{phycell_forward.1} parent=11 // pred_fallthru
        _
      // Predicated region
      $region17: #{phycell_forward.1} parent=11 // pred_check
        %p167 = pneg %p81
      $region18: #{phycell_forward.1} parent=11 // pred_check_branch
        %169 = sbr.rel (%p167) target = $region20
      $region19: #{phycell_forward.1} parent=11 // pred_region
        _
      $region20: #{phycell_forward.1} parent=11 // pred_fallthru
        _
      // Predicated region
      $region21: #{phycell_forward.1} parent=11 // pred_check
        %p170 = pneg %p102
      $region22: #{phycell_forward.1} parent=11 // pred_check_branch
        %172 = sbr.rel (%p170) target = $region24
      $region23: #{phycell_forward.1} parent=11 // pred_region
        _
      $region24: #{phycell_forward.1} parent=11 // pred_fallthru
        _
      // Predicated region
      $region25: #{phycell_forward.1} parent=11 // pred_check
        %p173 = pneg %p123
      $region26: #{phycell_forward.1} parent=11 // pred_check_branch
        %175 = sbr.rel (%p173) target = $region28
      $region27: #{phycell_forward.1} parent=11 // pred_region
        _
      $region28: #{phycell_forward.1} parent=11 // pred_fallthru
        _
    $region12: #{phycell_forward.1} parent=5 // pred_fallthru
      _
    %p176 = scmp.lt.s32.totalorder %s13, 2
    // Predicated region
    $region29: #{phycell_forward.1} parent=5 // pred_check
      %p177 = pneg %p176
    $region30: #{phycell_forward.1} parent=5 // pred_check_branch
      %179 = sbr.rel (%p177) target = $region32
    $region31: #{phycell_forward.1} parent=5 // pred_region
      // Predicated region
      $region33: #{phycell_forward.1} parent=31 // pred_check
        %p180 = pneg %p33
      $region34: #{phycell_forward.1} parent=31 // pred_check_branch
        %182 = sbr.rel (%p180) target = $region36
      $region35: #{phycell_forward.1} parent=31 // pred_region
        %p183 = scmp.lt.s32.totalorder %s13, 1
        %s184 = scalar_select %p183, %s13, 1
        %s185 = smul.addr %s184, 3
        %s186 = smul.addr %s185, 4
        %s187 = scalar_lea.vmem %s0, %s186
      $region36: #{phycell_forward.1} parent=31 // pred_fallthru
        _
    $region32: #{phycell_forward.1} parent=5 // pred_fallthru
      _
    %p188 = scmp.le.s32.totalorder 1, %s13
    %p189 = scmp.lt.s32.totalorder %s13, 3
    %p190 = pnand %p188, %p189
    %p191 = pneg %p190
    // Predicated region
    $region37: #{phycell_forward.1} parent=5 // pred_check
      _
    $region38: #{phycell_forward.1} parent=5 // pred_check_branch
      %193 = sbr.rel (%p190) target = $region40
    $region39: #{phycell_forward.1} parent=5 // pred_region
      %s194 = ssub.s32 %s13, 1
      %p195 = scmp.lt.s32.totalorder %s18, 1
      %s196 = scalar_select %p195, %s18, 1
      %s197 = smul.addr %s196, 3
      %s198 = smul.addr %s197, 4
      %s199 = scalar_lea.vmem %s0, %s198
      %p200 = pneg %p39
      %p201 = pneg %p36
      %p202 = pneg %p60
      %p203 = pneg %p57
      %p204 = pneg %p81
      %p205 = pneg %p78
      %p206 = pneg %p102
      %p207 = pneg %p99
      %p208 = pneg %p123
      %p209 = pneg %p120
      %p210 = pneg %p149
      %p211 = pneg %p146
      %p212 = scmp.lt.s32.totalorder %s18, 1
      %s213 = scalar_select %p212, %s18, 1
      %s214 = smul.addr %s213, 2
      %s215 = scalar_lea.vmem %s5, %s214
      %p216 = scmp.lt.s32.totalorder %s18, 1
      %s217 = scalar_select %p216, %s18, 1
      %s218 = smul.addr %s217, 3
      %s219 = smul.addr %s218, 4
      %s220 = scalar_lea.vmem %s0, %s219
      %p221 = scmp.lt.s32.totalorder %s18, 1
      %s222 = scalar_select %p221, %s18, 1
      %s223 = smul.addr %s222, 2
      %s224 = scalar_lea.vmem %s5, %s223
      %v226 = vld [vmem:[%s220] sm:$0xff]
      %v227 = vld [vmem:[%s220 + $0x8] sm:$0xf]
      %v228 = vunpack.c.l.bf16 %v226
      %v229 = vunpack.c.h.bf16 %v226
      %v230 = vunpack.c.l.bf16 %v227
      %v234 = vrot.slane %v228, 1
      %v235 = vrot.slane %v229, 1
      %v236 = vrot.slane %v230, 1
      %237 = vrot.lane.b32.xlu0 %v234, 112
      %v238 = vpop.permute.xlu0 %237
      %239 = vrot.lane.b32.xlu0 %v235, 112
      %v240 = vpop.permute.xlu0 %239
      %241 = vrot.lane.b32.xlu0 %v236, 112
      %v242 = vpop.permute.xlu0 %241
      %vm243 = vcmask 916480
      %v244 = vsel %vm243, %v238, %v240
      %v245 = vsel %vm243, %v240, %v242
      %v248 = vrot.slane %v228, 2
      %v249 = vrot.slane %v229, 2
      %v250 = vrot.slane %v230, 2
      %251 = vrot.lane.b32.xlu0 %v248, 96
      %v252 = vpop.permute.xlu0 %251
      %253 = vrot.lane.b32.xlu0 %v249, 96
      %v254 = vpop.permute.xlu0 %253
      %255 = vrot.lane.b32.xlu0 %v250, 96
      %v256 = vpop.permute.xlu0 %255
      %vm257 = vcmask 785408
      %v258 = vsel %vm257, %v252, %v254
      %v259 = vsel %vm257, %v254, %v256
      %v262 = vrot.slane %v228, 3
      %v263 = vrot.slane %v229, 3
      %v264 = vrot.slane %v230, 3
      %265 = vrot.lane.b32.xlu0 %v262, 80
      %v266 = vpop.permute.xlu0 %265
      %267 = vrot.lane.b32.xlu0 %v263, 80
      %v268 = vpop.permute.xlu0 %267
      %269 = vrot.lane.b32.xlu0 %v264, 80
      %v270 = vpop.permute.xlu0 %269
      %vm271 = vcmask 654336
      %v272 = vsel %vm271, %v266, %v268
      %v273 = vsel %vm271, %v268, %v270
      %v276 = vrot.slane %v228, 4
      %v277 = vrot.slane %v229, 4
      %v278 = vrot.slane %v230, 4
      %279 = vrot.lane.b32.xlu0 %v276, 64
      %v280 = vpop.permute.xlu0 %279
      %281 = vrot.lane.b32.xlu0 %v277, 64
      %v282 = vpop.permute.xlu0 %281
      %283 = vrot.lane.b32.xlu0 %v278, 64
      %v284 = vpop.permute.xlu0 %283
      %vm285 = vcmask 523264
      %v286 = vsel %vm285, %v280, %v282
      %v287 = vsel %vm285, %v282, %v284
      %v290 = vrot.slane %v228, 5
      %v291 = vrot.slane %v229, 5
      %v292 = vrot.slane %v230, 5
      %293 = vrot.lane.b32.xlu0 %v290, 48
      %v294 = vpop.permute.xlu0 %293
      %295 = vrot.lane.b32.xlu0 %v291, 48
      %v296 = vpop.permute.xlu0 %295
      %297 = vrot.lane.b32.xlu0 %v292, 48
      %v298 = vpop.permute.xlu0 %297
      %vm299 = vcmask 392192
      %v300 = vsel %vm299, %v294, %v296
      %v301 = vsel %vm299, %v296, %v298
      %v304 = vrot.slane %v228, 6
      %v305 = vrot.slane %v229, 6
      %v306 = vrot.slane %v230, 6
      %307 = vrot.lane.b32.xlu0 %v304, 32
      %v308 = vpop.permute.xlu0 %307
      %309 = vrot.lane.b32.xlu0 %v305, 32
      %v310 = vpop.permute.xlu0 %309
      %311 = vrot.lane.b32.xlu0 %v306, 32
      %v312 = vpop.permute.xlu0 %311
      %vm313 = vcmask 261120
      %v314 = vsel %vm313, %v308, %v310
      %v315 = vsel %vm313, %v310, %v312
      %vm318 = vcmask 1046528
      %v319 = vsel %vm318, %v228, %v244
      %v320 = vsel %vm318, %v229, %v245
      %vm321 = vcmask 1045504
      %v322 = vsel %vm321, %v244, %v258
      %v323 = vsel %vm321, %v245, %v259
      %vm324 = vcmask 1044480
      %v325 = vsel %vm324, %v258, %v272
      %v326 = vsel %vm324, %v259, %v273
      %vm327 = vcmask 1043456
      %v328 = vsel %vm327, %v272, %v286
      %v329 = vsel %vm327, %v273, %v287
      %vm330 = vcmask 1042432
      %v331 = vsel %vm330, %v286, %v300
      %v332 = vsel %vm330, %v287, %v301
      %vm333 = vcmask 1041408
      %v334 = vsel %vm333, %v300, %v314
      %v335 = vsel %vm333, %v301, %v315
      %v336 = vld [vmem:[%s1] sm:$0xf]
      %v337 = vld [vmem:[%s1 + $0x4] sm:$0xf]
      %v338 = vld [vmem:[%s1 + $0x8] sm:$0xf]
      %v339 = vld [vmem:[%s1 + $0xc] sm:$0xf]
      %v340 = vld [vmem:[%s1 + $0x10] sm:$0xf]
      %v341 = vld [vmem:[%s1 + $0x14] sm:$0xf]
      %v342 = vld [vmem:[%s1 + $0x18] sm:$0x1]
      %v343 = vpack.c.bf16 %v322, %v319
      %v344 = vpack.c.bf16 %v323, %v320
      %v345 = vpack.c.bf16 %v328, %v325
      %v346 = vpack.c.bf16 %v329, %v326
      %v347 = vpack.c.bf16 %v334, %v331
      %v348 = vpack.c.bf16 %v335, %v332
      %v349 = vpack.c.bf16 %v314, %v314
      %v350 = vpack.c.bf16 %v315, %v315
      %v351 = vld [vmem:[%s2] sm:$0xff]
      %v352 = vld [vmem:[%s2 + $0x8] sm:$0xff]
      %v353 = vld [vmem:[%s2 + $0x10] sm:$0xff]
      %v354 = vld [vmem:[%s2 + $0x18] sm:$0xff]
      %v355 = vld [vmem:[%s2 + $0x20] sm:$0xff]
      %v356 = vld [vmem:[%s2 + $0x28] sm:$0xff]
      %v357 = vld [vmem:[%s2 + $0x30] sm:$0x1]
      %359 = vset.pattern.permute.xlu0 0
      %360 = vperm.xlu0 %359, %v351
      %v361 = vpop.permute.xlu0 %360
      %364 = vset.pattern.permute.xlu0 0
      %365 = vperm.xlu0 %364, %v352
      %v366 = vpop.permute.xlu0 %365
      %369 = vset.pattern.permute.xlu0 0
      %370 = vperm.xlu0 %369, %v353
      %v371 = vpop.permute.xlu0 %370
      %374 = vset.pattern.permute.xlu0 0
      %375 = vperm.xlu0 %374, %v354
      %v376 = vpop.permute.xlu0 %375
      %379 = vset.pattern.permute.xlu0 0
      %380 = vperm.xlu0 %379, %v355
      %v381 = vpop.permute.xlu0 %380
      %384 = vset.pattern.permute.xlu0 0
      %385 = vperm.xlu0 %384, %v356
      %v386 = vpop.permute.xlu0 %385
      %389 = vset.pattern.permute.xlu0 0
      %390 = vperm.xlu0 %389, %v357
      %v391 = vpop.permute.xlu0 %390
      %v400 = vunpack.c.l.b16 %v336
      %v401 = vunpack.c.l.b16 %v337
      %v402 = vunpack.c.l.b16 %v338
      %v403 = vunpack.c.l.b16 %v339
      %v404 = vunpack.c.l.b16 %v340
      %v405 = vunpack.c.l.b16 %v341
      %v406 = vunpack.c.l.b16 %v342
      %v407 = vpack.c.b16 %v401, %v400
      %v408 = vpack.c.b16 %v403, %v402
      %v409 = vpack.c.b16 %v405, %v404
      %v410 = vpack.c.b16 %v406, %v406
      %vm411 = vcmask 400384
      %v413 = vsel %vm411, %v407, 0
      %v416 = vsel %vm411, %v408, 0
      %v419 = vsel %vm411, %v409, 0
      %v422 = vsel %vm411, %v410, 0
      %vm424 = vcmask 1040384
      %v425 = vsel 0, 4294967295, 65535
      %v426 = vsel %vm424, %v425, 0
      %v428 = vand.u32 %v349, %v426
      %v431 = vand.u32 %v350, %v426
      %433 = vmatpush.bf16.msra.mxu0 0
      %434 = vmatpush.bf16.msra.mxu0 0
      %435 = vmatpush.bf16.msra.mxu0 0
      %436 = vmatpush.bf16.msra.mxu0 0
      %437 = vmatpush.bf16.msra.mxu0 %v428
      %438 = vmatpush.bf16.msra.mxu0 %v347
      %439 = vmatpush.bf16.msra.mxu0 %v345
      %440 = vmatpush.bf16.msra.mxu0 %v343
      %441 = vmatmul.bf16.gmra.mxu0 %v413
      %v442 = vpop.f32.mrf.mxu0
      %v443 = vadd.f32 %v361, %v442
      %v444 = vpop.f32.mrf.mxu0
      %v445 = vadd.f32 %v366, %v444
      %446 = vmatmul.bf16.gmra.mxu0 %v416
      %v447 = vpop.f32.mrf.mxu0
      %v448 = vadd.f32 %v371, %v447
      %v449 = vpop.f32.mrf.mxu0
      %v450 = vadd.f32 %v376, %v449
      %451 = vmatmul.bf16.gmra.mxu0 %v419
      %v452 = vpop.f32.mrf.mxu0
      %v453 = vadd.f32 %v381, %v452
      %v454 = vpop.f32.mrf.mxu0
      %v455 = vadd.f32 %v386, %v454
      %456 = vmatmul.bf16.gmra.mxu0 %v422
      %v457 = vpop.f32.mrf.mxu0
      %v458 = vadd.f32 %v391, %v457
      %v459 = vpop.f32.mrf.mxu0
      %460 = vdwg.mxu0
      %461 = vmatpush.bf16.msra.mxu0 0
      %462 = vmatpush.bf16.msra.mxu0 0
      %463 = vmatpush.bf16.msra.mxu0 0
      %464 = vmatpush.bf16.msra.mxu0 0
      %465 = vmatpush.bf16.msra.mxu0 %v431
      %466 = vmatpush.bf16.msra.mxu0 %v348
      %467 = vmatpush.bf16.msra.mxu0 %v346
      %468 = vmatpush.bf16.msra.mxu0 %v344
      %469 = vmatmul.bf16.gmra.mxu0 %v413
      %v470 = vpop.f32.mrf.mxu0
      %v471 = vadd.f32 %v361, %v470
      %v472 = vpop.f32.mrf.mxu0
      %v473 = vadd.f32 %v366, %v472
      %474 = vmatmul.bf16.gmra.mxu0 %v416
      %v475 = vpop.f32.mrf.mxu0
      %v476 = vadd.f32 %v371, %v475
      %v477 = vpop.f32.mrf.mxu0
      %v478 = vadd.f32 %v376, %v477
      %479 = vmatmul.bf16.gmra.mxu0 %v419
      %v480 = vpop.f32.mrf.mxu0
      %v481 = vadd.f32 %v381, %v480
      %v482 = vpop.f32.mrf.mxu0
      %v483 = vadd.f32 %v386, %v482
      %484 = vmatmul.bf16.gmra.mxu0 %v422
      %v485 = vpop.f32.mrf.mxu0
      %v486 = vadd.f32 %v391, %v485
      %v487 = vpop.f32.mrf.mxu0
      %488 = vdwg.mxu0
      %v489 = vld [vmem:[%s3] sm:$0xff]
      %v490 = vld [vmem:[%s3 + $0x8] sm:$0xff]
      %v491 = vld [vmem:[%s3 + $0x10] sm:$0xff]
      %v492 = vld [vmem:[%s3 + $0x18] sm:$0xff]
      %v493 = vld [vmem:[%s3 + $0x20] sm:$0xff]
      %v494 = vld [vmem:[%s3 + $0x28] sm:$0xff]
      %v495 = vld [vmem:[%s3 + $0x30] sm:$0x1]
      %v496 = vld [vmem:[#allocation2] sm:$0x1]
      %v497 = vadd.f32 %v443, %v471
      %498 = vadd.xlane.f32.xlu0 %v497
      %v499 = vpop.xlane.xlu0 %498
      %v500 = vadd.f32 %v445, %v473
      %501 = vadd.xlane.f32.xlu0 %v500
      %v502 = vpop.xlane.xlu0 %501
      %v503 = vadd.f32 %v448, %v476
      %504 = vadd.xlane.f32.xlu0 %v503
      %v505 = vpop.xlane.xlu0 %504
      %v506 = vadd.f32 %v450, %v478
      %507 = vadd.xlane.f32.xlu0 %v506
      %v508 = vpop.xlane.xlu0 %507
      %v509 = vadd.f32 %v453, %v481
      %510 = vadd.xlane.f32.xlu0 %v509
      %v511 = vpop.xlane.xlu0 %510
      %v512 = vadd.f32 %v455, %v483
      %513 = vadd.xlane.f32.xlu0 %v512
      %v514 = vpop.xlane.xlu0 %513
      %v515 = vsel %vm424, %v458, 0.0
      %v516 = vsel %vm424, %v486, 0.0
      %v517 = vadd.f32 %v515, %v516
      %518 = vadd.xlane.f32.xlu0 %v517
      %v519 = vpop.xlane.xlu0 %518
      %v520 = vmul.f32 %v443, %v443
      %v521 = vmul.f32 %v471, %v471
      %v522 = vmul.f32 %v445, %v445
      %v523 = vmul.f32 %v473, %v473
      %v524 = vmul.f32 %v448, %v448
      %v525 = vmul.f32 %v476, %v476
      %v526 = vmul.f32 %v450, %v450
      %v527 = vmul.f32 %v478, %v478
      %v528 = vmul.f32 %v453, %v453
      %v529 = vmul.f32 %v481, %v481
      %v530 = vmul.f32 %v455, %v455
      %v531 = vmul.f32 %v483, %v483
      %v532 = vmul.f32 %v458, %v458
      %v533 = vmul.f32 %v486, %v486
      %v534 = vadd.f32 %v520, %v521
      %535 = vadd.xlane.f32.xlu0 %v534
      %v536 = vpop.xlane.xlu0 %535
      %v537 = vadd.f32 %v522, %v523
      %538 = vadd.xlane.f32.xlu0 %v537
      %v539 = vpop.xlane.xlu0 %538
      %v540 = vadd.f32 %v524, %v525
      %541 = vadd.xlane.f32.xlu0 %v540
      %v542 = vpop.xlane.xlu0 %541
      %v543 = vadd.f32 %v526, %v527
      %544 = vadd.xlane.f32.xlu0 %v543
      %v545 = vpop.xlane.xlu0 %544
      %v546 = vadd.f32 %v528, %v529
      %547 = vadd.xlane.f32.xlu0 %v546
      %v548 = vpop.xlane.xlu0 %547
      %v549 = vadd.f32 %v530, %v531
      %550 = vadd.xlane.f32.xlu0 %v549
      %v551 = vpop.xlane.xlu0 %550
      %v552 = vsel %vm424, %v532, 0.0
      %v553 = vsel %vm424, %v533, 0.0
      %v554 = vadd.f32 %v552, %v553
      %555 = vadd.xlane.f32.xlu0 %v554
      %v556 = vpop.xlane.xlu0 %555
      %v557 = vsel %vm318, %v499, 0.0
      %v558 = vrot.slane %v557, 4
      %v559 = vadd.f32 %v557, %v558
      %v560 = vrot.slane %v559, 2
      %v561 = vadd.f32 %v559, %v560
      %v562 = vrot.slane %v561, 1
      %v563 = vadd.f32 %v561, %v562
      %v564 = vmul.f32 %v563, 0.00055803574
      %v565 = vsel %vm318, %v536, 0.0
      %v566 = vrot.slane %v565, 4
      %v567 = vadd.f32 %v565, %v566
      %v568 = vrot.slane %v567, 2
      %v569 = vadd.f32 %v567, %v568
      %v570 = vrot.slane %v569, 1
      %v571 = vadd.f32 %v569, %v570
      %v572 = vmul.f32 %v571, 0.00055803574
      %v573 = vmul.f32 %v564, %v564
      %v574 = vsub.f32 %v572, %v573
      %v575 = vadd.f32 %v574, 1e-05
      %v576 = vrsqrt.pop %v575
      %v577 = vmul.f32 %v576, %v575
      %v578 = vmul.f32 %v577, %v576
      %v579 = vmul.f32 0.5, %v578
      %v580 = vsub.f32 1.5, %v579
      %v581 = vmul.f32 %v576, %v580
      %vm582 = vweird.f32 %v575
      %vm583 = vweird.f32 %v576
      %vm584 = vmor %vm582, %vm583
      %v585 = vsel %vm584, %v576, %v581
      %v588 = vrot.slane %v499, 7
      %v589 = vrot.slane %v502, 7
      %v590 = vsel %vm424, %v588, %v589
      %v592 = vsel %vm318, %v590, 0.0
      %v593 = vrot.slane %v592, 4
      %v594 = vadd.f32 %v592, %v593
      %v595 = vrot.slane %v594, 2
      %v596 = vadd.f32 %v594, %v595
      %v597 = vrot.slane %v596, 1
      %v598 = vadd.f32 %v596, %v597
      %v599 = vmul.f32 %v598, 0.00055803574
      %v602 = vrot.slane %v536, 7
      %v603 = vrot.slane %v539, 7
      %v604 = vsel %vm424, %v602, %v603
      %v606 = vsel %vm318, %v604, 0.0
      %v607 = vrot.slane %v606, 4
      %v608 = vadd.f32 %v606, %v607
      %v609 = vrot.slane %v608, 2
      %v610 = vadd.f32 %v608, %v609
      %v611 = vrot.slane %v610, 1
      %v612 = vadd.f32 %v610, %v611
      %v613 = vmul.f32 %v612, 0.00055803574
      %v614 = vmul.f32 %v599, %v599
      %v615 = vsub.f32 %v613, %v614
      %v616 = vadd.f32 %v615, 1e-05
      %v617 = vrsqrt.pop %v616
      %v618 = vmul.f32 %v617, %v616
      %v619 = vmul.f32 %v618, %v617
      %v620 = vmul.f32 0.5, %v619
      %v621 = vsub.f32 1.5, %v620
      %v622 = vmul.f32 %v617, %v621
      %vm623 = vweird.f32 %v616
      %vm624 = vweird.f32 %v617
      %vm625 = vmor %vm623, %vm624
      %v626 = vsel %vm625, %v617, %v622
      %v628 = vrot.slane %v502, 6
      %v629 = vrot.slane %v505, 6
      %v630 = vsel %vm333, %v628, %v629
      %v632 = vsel %vm318, %v630, 0.0
      %v633 = vrot.slane %v632, 4
      %v634 = vadd.f32 %v632, %v633
      %v635 = vrot.slane %v634, 2
      %v636 = vadd.f32 %v634, %v635
      %v637 = vrot.slane %v636, 1
      %v638 = vadd.f32 %v636, %v637
      %v639 = vmul.f32 %v638, 0.00055803574
      %v641 = vrot.slane %v539, 6
      %v642 = vrot.slane %v542, 6
      %v643 = vsel %vm333, %v641, %v642
      %v645 = vsel %vm318, %v643, 0.0
      %v646 = vrot.slane %v645, 4
      %v647 = vadd.f32 %v645, %v646
      %v648 = vrot.slane %v647, 2
      %v649 = vadd.f32 %v647, %v648
      %v650 = vrot.slane %v649, 1
      %v651 = vadd.f32 %v649, %v650
      %v652 = vmul.f32 %v651, 0.00055803574
      %v653 = vmul.f32 %v639, %v639
      %v654 = vsub.f32 %v652, %v653
      %v655 = vadd.f32 %v654, 1e-05
      %v656 = vrsqrt.pop %v655
      %v657 = vmul.f32 %v656, %v655
      %v658 = vmul.f32 %v657, %v656
      %v659 = vmul.f32 0.5, %v658
      %v660 = vsub.f32 1.5, %v659
      %v661 = vmul.f32 %v656, %v660
      %vm662 = vweird.f32 %v655
      %vm663 = vweird.f32 %v656
      %vm664 = vmor %vm662, %vm663
      %v665 = vsel %vm664, %v656, %v661
      %v667 = vrot.slane %v505, 5
      %v668 = vrot.slane %v508, 5
      %v669 = vsel %vm330, %v667, %v668
      %v671 = vsel %vm318, %v669, 0.0
      %v672 = vrot.slane %v671, 4
      %v673 = vadd.f32 %v671, %v672
      %v674 = vrot.slane %v673, 2
      %v675 = vadd.f32 %v673, %v674
      %v676 = vrot.slane %v675, 1
      %v677 = vadd.f32 %v675, %v676
      %v678 = vmul.f32 %v677, 0.00055803574
      %v680 = vrot.slane %v542, 5
      %v681 = vrot.slane %v545, 5
      %v682 = vsel %vm330, %v680, %v681
      %v684 = vsel %vm318, %v682, 0.0
      %v685 = vrot.slane %v684, 4
      %v686 = vadd.f32 %v684, %v685
      %v687 = vrot.slane %v686, 2
      %v688 = vadd.f32 %v686, %v687
      %v689 = vrot.slane %v688, 1
      %v690 = vadd.f32 %v688, %v689
      %v691 = vmul.f32 %v690, 0.00055803574
      %v692 = vmul.f32 %v678, %v678
      %v693 = vsub.f32 %v691, %v692
      %v694 = vadd.f32 %v693, 1e-05
      %v695 = vrsqrt.pop %v694
      %v696 = vmul.f32 %v695, %v694
      %v697 = vmul.f32 %v696, %v695
      %v698 = vmul.f32 0.5, %v697
      %v699 = vsub.f32 1.5, %v698
      %v700 = vmul.f32 %v695, %v699
      %vm701 = vweird.f32 %v694
      %vm702 = vweird.f32 %v695
      %vm703 = vmor %vm701, %vm702
      %v704 = vsel %vm703, %v695, %v700
      %v706 = vrot.slane %v508, 4
      %v707 = vrot.slane %v511, 4
      %v708 = vsel %vm327, %v706, %v707
      %v710 = vsel %vm318, %v708, 0.0
      %v711 = vrot.slane %v710, 4
      %v712 = vadd.f32 %v710, %v711
      %v713 = vrot.slane %v712, 2
      %v714 = vadd.f32 %v712, %v713
      %v715 = vrot.slane %v714, 1
      %v716 = vadd.f32 %v714, %v715
      %v717 = vmul.f32 %v716, 0.00055803574
      %v719 = vrot.slane %v545, 4
      %v720 = vrot.slane %v548, 4
      %v721 = vsel %vm327, %v719, %v720
      %v723 = vsel %vm318, %v721, 0.0
      %v724 = vrot.slane %v723, 4
      %v725 = vadd.f32 %v723, %v724
      %v726 = vrot.slane %v725, 2
      %v727 = vadd.f32 %v725, %v726
      %v728 = vrot.slane %v727, 1
      %v729 = vadd.f32 %v727, %v728
      %v730 = vmul.f32 %v729, 0.00055803574
      %v731 = vmul.f32 %v717, %v717
      %v732 = vsub.f32 %v730, %v731
      %v733 = vadd.f32 %v732, 1e-05
      %v734 = vrsqrt.pop %v733
      %v735 = vmul.f32 %v734, %v733
      %v736 = vmul.f32 %v735, %v734
      %v737 = vmul.f32 0.5, %v736
      %v738 = vsub.f32 1.5, %v737
      %v739 = vmul.f32 %v734, %v738
      %vm740 = vweird.f32 %v733
      %vm741 = vweird.f32 %v734
      %vm742 = vmor %vm740, %vm741
      %v743 = vsel %vm742, %v734, %v739
      %v745 = vrot.slane %v511, 3
      %v746 = vrot.slane %v514, 3
      %v747 = vsel %vm324, %v745, %v746
      %v749 = vsel %vm318, %v747, 0.0
      %v750 = vrot.slane %v749, 4
      %v751 = vadd.f32 %v749, %v750
      %v752 = vrot.slane %v751, 2
      %v753 = vadd.f32 %v751, %v752
      %v754 = vrot.slane %v753, 1
      %v755 = vadd.f32 %v753, %v754
      %v756 = vmul.f32 %v755, 0.00055803574
      %v758 = vrot.slane %v548, 3
      %v759 = vrot.slane %v551, 3
      %v760 = vsel %vm324, %v758, %v759
      %v762 = vsel %vm318, %v760, 0.0
      %v763 = vrot.slane %v762, 4
      %v764 = vadd.f32 %v762, %v763
      %v765 = vrot.slane %v764, 2
      %v766 = vadd.f32 %v764, %v765
      %v767 = vrot.slane %v766, 1
      %v768 = vadd.f32 %v766, %v767
      %v769 = vmul.f32 %v768, 0.00055803574
      %v770 = vmul.f32 %v756, %v756
      %v771 = vsub.f32 %v769, %v770
      %v772 = vadd.f32 %v771, 1e-05
      %v773 = vrsqrt.pop %v772
      %v774 = vmul.f32 %v773, %v772
      %v775 = vmul.f32 %v774, %v773
      %v776 = vmul.f32 0.5, %v775
      %v777 = vsub.f32 1.5, %v776
      %v778 = vmul.f32 %v773, %v777
      %vm779 = vweird.f32 %v772
      %vm780 = vweird.f32 %v773
      %vm781 = vmor %vm779, %vm780
      %v782 = vsel %vm781, %v773, %v778
      %v784 = vrot.slane %v514, 2
      %v785 = vrot.slane %v519, 2
      %v786 = vsel %vm321, %v784, %v785
      %v788 = vsel %vm318, %v786, 0.0
      %v789 = vrot.slane %v788, 4
      %v790 = vadd.f32 %v788, %v789
      %v791 = vrot.slane %v790, 2
      %v792 = vadd.f32 %v790, %v791
      %v793 = vrot.slane %v792, 1
      %v794 = vadd.f32 %v792, %v793
      %v795 = vmul.f32 %v794, 0.00055803574
      %v797 = vrot.slane %v551, 2
      %v798 = vrot.slane %v556, 2
      %v799 = vsel %vm321, %v797, %v798
      %v801 = vsel %vm318, %v799, 0.0
      %v802 = vrot.slane %v801, 4
      %v803 = vadd.f32 %v801, %v802
      %v804 = vrot.slane %v803, 2
      %v805 = vadd.f32 %v803, %v804
      %v806 = vrot.slane %v805, 1
      %v807 = vadd.f32 %v805, %v806
      %v808 = vmul.f32 %v807, 0.00055803574
      %v809 = vmul.f32 %v795, %v795
      %v810 = vsub.f32 %v808, %v809
      %v811 = vadd.f32 %v810, 1e-05
      %v812 = vrsqrt.pop %v811
      %v813 = vmul.f32 %v812, %v811
      %v814 = vmul.f32 %v813, %v812
      %v815 = vmul.f32 0.5, %v814
      %v816 = vsub.f32 1.5, %v815
      %v817 = vmul.f32 %v812, %v816
      %vm818 = vweird.f32 %v811
      %vm819 = vweird.f32 %v812
      %vm820 = vmor %vm818, %vm819
      %v821 = vsel %vm820, %v812, %v817
      %v822 = vsel %vm318, %v564, %v599
      %v823 = vsel %vm321, %v599, %v639
      %v824 = vsel %vm324, %v639, %v678
      %v825 = vsel %vm327, %v678, %v717
      %v826 = vsel %vm330, %v717, %v756
      %v827 = vsel %vm333, %v756, %v795
      %v828 = vsel %vm318, %v585, %v626
      %v829 = vsel %vm321, %v626, %v665
      %v830 = vsel %vm324, %v665, %v704
      %v831 = vsel %vm327, %v704, %v743
      %v832 = vsel %vm330, %v743, %v782
      %v833 = vsel %vm333, %v782, %v821
      %v834 = vmul.f32 %v489, %v828
      %v835 = vmul.f32 %v490, %v829
      %v836 = vmul.f32 %v491, %v830
      %v837 = vmul.f32 %v492, %v831
      %v838 = vmul.f32 %v493, %v832
      %v839 = vmul.f32 %v494, %v833
      %v840 = vmul.f32 %v495, %v821
      %v841 = vmul.f32 %v834, %v822
      %v842 = vmul.f32 %v835, %v823
      %v843 = vmul.f32 %v836, %v824
      %v844 = vmul.f32 %v837, %v825
      %v845 = vmul.f32 %v838, %v826
      %v846 = vmul.f32 %v839, %v827
      %v847 = vmul.f32 %v840, %v795
      %vm848 = vcmask 7168
      %v849 = vsel %vm848, %v841, 0.0
      %v850 = vsel %vm848, %v842, 0.0
      %v851 = vadd.f32 %v849, %v850
      %v852 = vsel %vm848, %v843, 0.0
      %v853 = vadd.f32 %v851, %v852
      %v854 = vsel %vm848, %v844, 0.0
      %v855 = vadd.f32 %v853, %v854
      %v856 = vsel %vm848, %v845, 0.0
      %v857 = vadd.f32 %v855, %v856
      %v858 = vsel %vm848, %v846, 0.0
      %v859 = vadd.f32 %v857, %v858
      %vm860 = vcmask 0
      %v861 = vsel %vm860, %v847, 0.0
      %v862 = vadd.f32 %v859, %v861
      %v863 = vrot.slane %v862, 4
      %v864 = vadd.f32 %v862, %v863
      %v865 = vrot.slane %v864, 2
      %v866 = vadd.f32 %v864, %v865
      %v867 = vrot.slane %v866, 1
      %v868 = vadd.f32 %v866, %v867
      %v869 = vsub.f32 %v496, %v868
      %871 = vset.pattern.permute.xlu0 0
      %872 = vperm.xlu0 %871, %v834
      %v873 = vpop.permute.xlu0 %872
      %876 = vset.pattern.permute.xlu0 0
      %877 = vperm.xlu0 %876, %v835
      %v878 = vpop.permute.xlu0 %877
      %881 = vset.pattern.permute.xlu0 0
      %882 = vperm.xlu0 %881, %v836
      %v883 = vpop.permute.xlu0 %882
      %886 = vset.pattern.permute.xlu0 0
      %887 = vperm.xlu0 %886, %v837
      %v888 = vpop.permute.xlu0 %887
      %891 = vset.pattern.permute.xlu0 0
      %892 = vperm.xlu0 %891, %v838
      %v893 = vpop.permute.xlu0 %892
      %896 = vset.pattern.permute.xlu0 0
      %897 = vperm.xlu0 %896, %v839
      %v898 = vpop.permute.xlu0 %897
      %901 = vset.pattern.permute.xlu0 0
      %902 = vperm.xlu0 %901, %v840
      %v903 = vpop.permute.xlu0 %902
      %906 = vset.pattern.permute.xlu0 0
      %907 = vperm.xlu0 %906, %v869
      %v908 = vpop.permute.xlu0 %907
      %v910 = vperm.slane %v908, 0
      %v911 = vmul.f32 %v443, %v873
      %v912 = vmul.f32 %v471, %v873
      %v913 = vmul.f32 %v445, %v878
      %v914 = vmul.f32 %v473, %v878
      %v915 = vmul.f32 %v448, %v883
      %v916 = vmul.f32 %v476, %v883
      %v917 = vmul.f32 %v450, %v888
      %v918 = vmul.f32 %v478, %v888
      %v919 = vmul.f32 %v453, %v893
      %v920 = vmul.f32 %v481, %v893
      %v921 = vmul.f32 %v455, %v898
      %v922 = vmul.f32 %v483, %v898
      %v923 = vmul.f32 %v458, %v903
      %v924 = vmul.f32 %v486, %v903
      %v925 = vadd.f32 %v911, %v913
      %v926 = vadd.f32 %v925, %v915
      %v927 = vadd.f32 %v926, %v917
      %v928 = vadd.f32 %v927, %v919
      %v929 = vadd.f32 %v928, %v921
      %v930 = vsel %vm424, %v923, 0.0
      %v931 = vadd.f32 %v929, %v930
      %v932 = vrot.slane %v931, 4
      %v933 = vadd.f32 %v931, %v932
      %v934 = vrot.slane %v933, 2
      %v935 = vadd.f32 %v933, %v934
      %v936 = vrot.slane %v935, 1
      %v937 = vadd.f32 %v935, %v936
      %v938 = vadd.f32 %v912, %v914
      %v939 = vadd.f32 %v938, %v916
      %v940 = vadd.f32 %v939, %v918
      %v941 = vadd.f32 %v940, %v920
      %v942 = vadd.f32 %v941, %v922
      %v943 = vsel %vm424, %v924, 0.0
      %v944 = vadd.f32 %v942, %v943
      %v945 = vrot.slane %v944, 4
      %v946 = vadd.f32 %v944, %v945
      %v947 = vrot.slane %v946, 2
      %v948 = vadd.f32 %v946, %v947
      %v949 = vrot.slane %v948, 1
      %v950 = vadd.f32 %v948, %v949
      %v951 = vadd.f32 %v937, %v910
      %v952 = vadd.f32 %v950, %v910
      %v955 = vrot.slane %v952, 7
      %v956 = vsel %vm424, %v951, %v955
      %v958 = vlaneseq
      %vm959 = vcmp.ge.s32.totalorder %v958, 0
      %vm960 = vcmp.lt.s32.totalorder %v958, 256
      %vm961 = vmand %vm959, %vm960
      %962 = vst.msk [vmem:[%s224] sm:$0x3] %vm961, %v956
      %p963 = scmp.lt.s32.totalorder %s18, 1
      %s964 = scalar_select %p963, %s18, 1
      %s965 = smul.addr %s964, 2
      %s966 = scalar_lea.vmem %s5, %s965
      // Predicated region
      $region41: #{phycell_forward.1} parent=39 // pred_check
        %p967 = pneg %p146
      $region42: #{phycell_forward.1} parent=39 // pred_check_branch
        %969 = sbr.rel (%p967) target = $region44
      $region43: #{phycell_forward.1} parent=39 // pred_region
        _
      $region44: #{phycell_forward.1} parent=39 // pred_fallthru
        _
    $region40: #{phycell_forward.1} parent=5 // pred_fallthru
      _
    %p970 = scmp.le.s32.totalorder 2, %s13
    // Predicated region
    $region45: #{phycell_forward.1} parent=5 // pred_check
      %p971 = pneg %p970
    $region46: #{phycell_forward.1} parent=5 // pred_check_branch
      %973 = sbr.rel (%p971) target = $region48
    $region47: #{phycell_forward.1} parent=5 // pred_region
      %s974 = ssub.s32 %s13, 2
      // Predicated region
      $region49: #{phycell_forward.1} parent=47 // pred_check
        %p975 = pneg %p152
      $region50: #{phycell_forward.1} parent=47 // pred_check_branch
        %977 = sbr.rel (%p975) target = $region52
      $region51: #{phycell_forward.1} parent=47 // pred_region
        %p978 = scmp.lt.s32.totalorder %s19, 1
        %s979 = scalar_select %p978, %s19, 1
        %s980 = smul.addr %s979, 2
        %s981 = scalar_lea.vmem %s5, %s980
      $region52: #{phycell_forward.1} parent=47 // pred_fallthru
        _
    $region48: #{phycell_forward.1} parent=5 // pred_fallthru
      _
  $region6: #{phycell_forward.1} parent=0 // loop_footer
    %s17 = sadd.s32 1, %s13
  $region7: #{phycell_forward.1} parent=0 // loop_footer_branch
    %12 = sbr.rel target = $region3
  $region8: #{phycell_forward.1} parent=0 // loop_exit
    _

</llo_original>
